<compile_context>
chip_gen: v7x
topology: tpu7x:2x2x1
jax: 0.10.0
libtpu: 0.0.40
codegen_flags: <defaults>
</compile_context>

<pallas_src>
import functools

import jax
import jax.numpy as jnp
from jax import lax
from jax.experimental import pallas as pl
from jax.experimental.pallas import tpu as pltpu

_EPS = 1e-6
_LANE = 128
_SUBLANE = 8
_CHUNK_ROWS = 32          # inner-loop chunk: 4 f32 vregs per quantity
_MAX_BLOCK_ROWS = 8192    # f32: 4 MiB/input buffer -> 24 MiB double-buffered


def _round_down(x, m):
    return (x // m) * m


def _round_up(x, m):
    return ((x + m - 1) // m) * m


def _mve_loss_kernel(mu_ref, sig_ref, y_ref, p1_ref, p2_ref, p3_ref, *,
                     block_rows, chunk_rows, acc_rows, valid_rows_last,
                     eps, ragged):
    """One grid step: stream a (block_rows, 128) slab of the three inputs and
    emit (1, acc_rows, 128) lane-wise partial sums of the three losses.

    The element-wise losses are fused with the reduction: a chunked fori_loop
    accumulates into chunk-shaped f32 accumulators living in vregs (loop
    carries), so no full-block f32 loss intermediate is materialized/spilled.
    """

    def chunk_losses(mu, sig, y):
        mu = mu.astype(jnp.float32)
        sig = sig.astype(jnp.float32)
        y = y.astype(jnp.float32)
        se = sig + eps
        l1 = jnp.log(se)                                  # EUP
        diff = mu - y
        d2 = diff * diff
        # Exact reciprocal keeps the mean bit-close to x/y while issuing on the
        # EUP slot instead of a VALU divide sequence.
        l2 = d2 * pl.reciprocal(se, approx=False)
        return l1, l2, d2

    def accumulate(valid_rows):
        """Sum losses over the first `valid_rows` (static int) rows."""
        n_full = valid_rows // chunk_rows
        rem = valid_rows - n_full * chunk_rows
        a1 = jnp.zeros((chunk_rows, _LANE), jnp.float32)
        a2 = jnp.zeros_like(a1)
        a3 = jnp.zeros_like(a1)

        def body(i, accs):
            b1, b2, b3 = accs
            r0 = pl.multiple_of(i * chunk_rows, chunk_rows)
            sl = pl.ds(r0, chunk_rows)
            l1, l2, l3 = chunk_losses(mu_ref[sl, :], sig_ref[sl, :],
                                      y_ref[sl, :])
            return b1 + l1, b2 + l2, b3 + l3

        if n_full > 0:
            a1, a2, a3 = lax.fori_loop(0, n_full, body, (a1, a2, a3),
                                       unroll=min(8, n_full))
        if rem > 0:
            # Static remainder chunk (only reached on the ragged last block).
            # The chunk stays inside the VMEM block because block_rows is a
            # multiple of chunk_rows; rows past `valid_rows` hold garbage and
            # are masked AFTER the compute (exact, stops NaN/Inf propagation).
            r0 = n_full * chunk_rows
            sl = pl.ds(r0, chunk_rows)
            l1, l2, l3 = chunk_losses(mu_ref[sl, :], sig_ref[sl, :],
                                      y_ref[sl, :])
            rid = lax.broadcasted_iota(jnp.int32, (chunk_rows, _LANE), 0)
            keep = rid < rem
            a1 = a1 + jnp.where(keep, l1, 0.0)
            a2 = a2 + jnp.where(keep, l2, 0.0)
            a3 = a3 + jnp.where(keep, l3, 0.0)
        return a1, a2, a3

    def finish(a1, a2, a3):
        def to_partial(a):
            if acc_rows == chunk_rows:
                return a
            # (chunk_rows,128) -> (chunk/acc, acc, 128): pure vreg+vreg adds.
            return jnp.sum(a.reshape(chunk_rows // acc_rows, acc_rows, _LANE),
                           axis=0)
        p1_ref[...] = to_partial(a1)[None]
        p2_ref[...] = to_partial(a2)[None]
        p3_ref[...] = to_partial(a3)[None]

    if not ragged:
        finish(*accumulate(block_rows))
    else:
        last = pl.num_programs(0) - 1

        @pl.when(pl.program_id(0) != last)
        def _():
            finish(*accumulate(block_rows))        # hot path: no masking

        @pl.when(pl.program_id(0) == last)
        def _():
            finish(*accumulate(valid_rows_last))   # cold path: masked tail


def mve_loss(y_hat, y, eps=_EPS):
    """Pallas implementation of MVELoss.forward((mu_hat, sigma_hat), y)."""
    mu_hat, sigma_hat = y_hat
    n_valid = int(mu_hat.size)

    mu_f = jnp.ravel(mu_hat)
    sig_f = jnp.ravel(sigma_hat)
    y_f = jnp.ravel(y)

    n_main = _round_down(n_valid, _LANE)
    rows = n_main // _LANE

    s1 = jnp.float32(0.0)
    s2 = jnp.float32(0.0)
    s3 = jnp.float32(0.0)

    if rows > 0:
        def slab(x):
            if int(x.size) != n_main:
                # TODO(synk): a contiguous prefix slice feeding a custom call
                # may still materialize one copy under XLA; it is never larger
                # than the old concatenate-pad copy and is skipped entirely
                # when numel % 128 == 0.
                x = lax.slice(x, (0,), (n_main,))
            return x.reshape(rows, _LANE)

        mu2, sig2, y2 = slab(mu_f), slab(sig_f), slab(y_f)

        # Sub-32-bit dtypes pack rows along sublanes -> stronger row alignment.
        min_bytes = min(mu2.dtype.itemsize, sig2.dtype.itemsize,
                        y2.dtype.itemsize)
        align = _SUBLANE * max(1, 4 // int(min_bytes))
        blk_align = max(align, _CHUNK_ROWS)

        if rows < blk_align:
            block_rows = rows            # single full-extent (tiny) block
            chunk_rows = rows
        else:
            chunk_rows = _CHUNK_ROWS
            block_rows = min(_MAX_BLOCK_ROWS, _round_down(rows, blk_align))
            nblocks = pl.cdiv(rows, block_rows)
            # v7x shards a "parallel" grid axis across its 2 TensorCores:
            # prefer an even block count so neither core idles.  Harmless on
            # single-core v5e / v6e (tiny extra per-step overhead at most).
            if nblocks % 2 == 1:
                cand = min(_MAX_BLOCK_ROWS,
                           _round_up(pl.cdiv(rows, nblocks + 1), blk_align))
                if cand >= blk_align and pl.cdiv(rows, cand) % 2 == 0:
                    block_rows = cand

        nblocks = pl.cdiv(rows, block_rows)
        ragged = (nblocks * block_rows) != rows
        valid_rows_last = rows - (nblocks - 1) * block_rows
        acc_rows = _SUBLANE if chunk_rows % _SUBLANE == 0 else chunk_rows

        kernel = functools.partial(
            _mve_loss_kernel, block_rows=block_rows, chunk_rows=chunk_rows,
            acc_rows=acc_rows, valid_rows_last=valid_rows_last, eps=eps,
            ragged=ragged)

        in_spec = pl.BlockSpec((block_rows, _LANE), lambda i: (i, 0))
        out_spec = pl.BlockSpec((1, acc_rows, _LANE), lambda i: (i, 0, 0))
        out_sds = jax.ShapeDtypeStruct((nblocks, acc_rows, _LANE), jnp.float32)

        # 3 inputs x 2 pipeline buffers + 3 small double-buffered outputs.
        in_bytes = 2 * block_rows * _LANE * (
            mu2.dtype.itemsize + sig2.dtype.itemsize + y2.dtype.itemsize)
        out_bytes = 2 * 3 * acc_rows * _LANE * 4
        vmem_limit = max(16 << 20, int(in_bytes + out_bytes + (2 << 20)))

        p1, p2, p3 = pl.pallas_call(
            kernel,
            out_shape=(out_sds, out_sds, out_sds),
            grid_spec=pltpu.PrefetchScalarGridSpec(
                num_scalar_prefetch=0,
                grid=(nblocks,),
                in_specs=[in_spec, in_spec, in_spec],
                out_specs=(out_spec, out_spec, out_spec),
            ),
            # Each grid step writes its own output block (no carried
            # accumulator) -> truly parallel axis, both v7x TensorCores used.
            compiler_params=pltpu.CompilerParams(
                dimension_semantics=("parallel",),
                vmem_limit_bytes=vmem_limit),
        )(mu2, sig2, y2)

        s1 = jnp.sum(p1)
        s2 = jnp.sum(p2)
        s3 = jnp.sum(p3)

    if n_main < n_valid:
        # <=127 leftover elements: plain-jnp tail instead of padding/copying
        # the full inputs just to make numel a multiple of 128.
        def tail(x):
            return lax.slice(x, (n_main,), (n_valid,)).astype(jnp.float32)

        mu_t, sig_t, y_t = tail(mu_f), tail(sig_f), tail(y_f)
        se_t = sig_t + eps
        d2_t = (mu_t - y_t) ** 2
        s1 = s1 + jnp.sum(jnp.log(se_t))
        s2 = s2 + jnp.sum(d2_t / se_t)
        s3 = s3 + jnp.sum(d2_t)

    inv_n = 1.0 / jnp.float32(n_valid)
    l1m = s1 * inv_n
    l2m = s2 * inv_n
    l3m = s3 * inv_n
    return l1m + l2m, l1m, l3m


def _mve_loss_ref(y_hat, y, eps=_EPS):
    """Pure-JAX reference matching the PyTorch module."""
    mu_hat, sigma_hat = y_hat
    loss1 = jnp.log(sigma_hat + eps)
    loss2 = (mu_hat - y) ** 2 / (sigma_hat + eps)
    loss3 = (mu_hat - y) ** 2
    l1m = loss1.mean()
    l2m = loss2.mean()
    l3m = loss3.mean()
    return l1m + l2m, l1m, l3m


if __name__ == "__main__":
    key = jax.random.PRNGKey(0)
    k_mu, k_sig, k_y = jax.random.split(key, 3)

    def check(shape, dtype, rtol, atol):
        mu = jax.random.normal(k_mu, shape, dtype=jnp.float32)
        sig = jax.nn.softplus(
            jax.random.normal(k_sig, shape, dtype=jnp.float32)) + 0.1
        yt = jax.random.normal(k_y, shape, dtype=jnp.float32)
        mu, sig, yt = (a.astype(dtype) for a in (mu, sig, yt))
        got = jax.block_until_ready(mve_loss((mu, sig), yt))
        ref = _mve_loss_ref((mu.astype(jnp.float32), sig.astype(jnp.float32)),
                            yt.astype(jnp.float32))
        for g, w in zip(got, ref):
            assert jnp.allclose(g, w, rtol=rtol, atol=atol), (shape, dtype, g, w)

    # Small image-like batch (tiny single-block path).
    check((2, 4, 16, 16), jnp.float32, 1e-5, 1e-5)
    # Bigger ragged case: exercises the chunked fori_loop, the pl.when-gated
    # masked last block and the <128-element wrapper tail.
    check((2, 4, 89, 88), jnp.float32, 1e-5, 1e-5)
    # Native bf16 inputs (half the HBM bytes streamed; the kernel upcasts).
    check((2, 4, 16, 16), jnp.bfloat16, 1e-4, 1e-4)
    check((2, 4, 89, 88), jnp.bfloat16, 1e-4, 1e-4)

    print("KERNEL_OK")
</pallas_src>

<mosaic_0001>
module attributes {stable_mosaic.version = 11 : i64} {
  func.func @_mve_loss_kernel(%arg0: i32, %arg1: memref<16x128xf32, #tpu.memory_space<vmem>>, %arg2: memref<16x128xf32, #tpu.memory_space<vmem>>, %arg3: memref<16x128xf32, #tpu.memory_space<vmem>>, %arg4: memref<1x8x128xf32, #tpu.memory_space<vmem>>, %arg5: memref<1x8x128xf32, #tpu.memory_space<vmem>>, %arg6: memref<1x8x128xf32, #tpu.memory_space<vmem>>) attributes {dimension_semantics = [#tpu.dimension_semantics<parallel>], iteration_bounds = array<i64: 1>, scalar_prefetch = 0 : i64, scratch_operands = 0 : i64, tpu.core_type = #tpu.core_type<tc>, window_params = [{transform_indices = @transform_0, window_bounds = array<i64: 16, 128>}, {transform_indices = @transform_1, window_bounds = array<i64: 16, 128>}, {transform_indices = @transform_2, window_bounds = array<i64: 16, 128>}, {transform_indices = @transform_3, window_bounds = array<i64: 1, 8, 128>}, {transform_indices = @transform_4, window_bounds = array<i64: 1, 8, 128>}, {transform_indices = @transform_5, window_bounds = array<i64: 1, 8, 128>}]} {
    %cst = arith.constant 0.000000e+00 : f32
    %0 = vector.broadcast %cst : f32 to vector<16x128xf32>
    %cst_0 = arith.constant 0.000000e+00 : f32
    %1 = vector.broadcast %cst_0 : f32 to vector<16x128xf32>
    %cst_1 = arith.constant 0.000000e+00 : f32
    %2 = vector.broadcast %cst_1 : f32 to vector<16x128xf32>
    %c0_i32 = arith.constant 0 : i32
    %c16_i32 = arith.constant 16 : i32
    %3 = arith.muli %c0_i32, %c16_i32 : i32
    %4 = tpu.assume_multiple %3, 16 : i32
    %5 = arith.index_cast %4 : i32 to index
    %c0 = arith.constant 0 : index
    %6 = vector.load %arg1[%5, %c0] : memref<16x128xf32, #tpu.memory_space<vmem>>, vector<16x128xf32>
    %7 = arith.index_cast %4 : i32 to index
    %c0_2 = arith.constant 0 : index
    %8 = vector.load %arg2[%7, %c0_2] : memref<16x128xf32, #tpu.memory_space<vmem>>, vector<16x128xf32>
    %9 = arith.index_cast %4 : i32 to index
    %c0_3 = arith.constant 0 : index
    %10 = vector.load %arg3[%9, %c0_3] : memref<16x128xf32, #tpu.memory_space<vmem>>, vector<16x128xf32>
    %cst_4 = arith.constant 9.99999997E-7 : f32
    %11 = vector.broadcast %cst_4 : f32 to vector<16x128xf32>
    %12 = arith.addf %8, %11 : vector<16x128xf32>
    %13 = math.log %12 : vector<16x128xf32>
    %14 = arith.subf %6, %10 : vector<16x128xf32>
    %15 = arith.mulf %14, %14 : vector<16x128xf32>
    %16 = tpu.reciprocal %12 : vector<16x128xf32> -> vector<16x128xf32>
    %17 = arith.mulf %15, %16 : vector<16x128xf32>
    %18 = arith.addf %0, %13 : vector<16x128xf32>
    %19 = arith.addf %1, %17 : vector<16x128xf32>
    %20 = arith.addf %2, %15 : vector<16x128xf32>
    %c1_i32 = arith.constant 1 : i32
    %21 = vector.shape_cast %18 : vector<16x128xf32> to vector<2x8x128xf32>
    %cst_5 = arith.constant dense<0.000000e+00> : vector<8x128xf32>
    %22 = vector.multi_reduction <add>, %21, %cst_5 [0] : vector<2x8x128xf32> to vector<8x128xf32>
    %23 = vector.shape_cast %22 : vector<8x128xf32> to vector<1x8x128xf32>
    %c0_6 = arith.constant 0 : index
    %c0_7 = arith.constant 0 : index
    %c0_8 = arith.constant 0 : index
    %24 = vector.load %arg4[%c0_6, %c0_7, %c0_8] : memref<1x8x128xf32, #tpu.memory_space<vmem>>, vector<1x8x128xf32>
    tpu.vector_store %arg4[%c0_6, %c0_7, %c0_8], %23 {strides = array<i32>} : memref<1x8x128xf32, #tpu.memory_space<vmem>>, vector<1x8x128xf32>,
    %25 = vector.shape_cast %19 : vector<16x128xf32> to vector<2x8x128xf32>
    %cst_9 = arith.constant dense<0.000000e+00> : vector<8x128xf32>
    %26 = vector.multi_reduction <add>, %25, %cst_9 [0] : vector<2x8x128xf32> to vector<8x128xf32>
    %27 = vector.shape_cast %26 : vector<8x128xf32> to vector<1x8x128xf32>
    %c0_10 = arith.constant 0 : index
    %c0_11 = arith.constant 0 : index
    %c0_12 = arith.constant 0 : index
    %28 = vector.load %arg5[%c0_10, %c0_11, %c0_12] : memref<1x8x128xf32, #tpu.memory_space<vmem>>, vector<1x8x128xf32>
    tpu.vector_store %arg5[%c0_10, %c0_11, %c0_12], %27 {strides = array<i32>} : memref<1x8x128xf32, #tpu.memory_space<vmem>>, vector<1x8x128xf32>,
    %29 = vector.shape_cast %20 : vector<16x128xf32> to vector<2x8x128xf32>
    %cst_13 = arith.constant dense<0.000000e+00> : vector<8x128xf32>
    %30 = vector.multi_reduction <add>, %29, %cst_13 [0] : vector<2x8x128xf32> to vector<8x128xf32>
    %31 = vector.shape_cast %30 : vector<8x128xf32> to vector<1x8x128xf32>
    %c0_14 = arith.constant 0 : index
    %c0_15 = arith.constant 0 : index
    %c0_16 = arith.constant 0 : index
    %32 = vector.load %arg6[%c0_14, %c0_15, %c0_16] : memref<1x8x128xf32, #tpu.memory_space<vmem>>, vector<1x8x128xf32>
    tpu.vector_store %arg6[%c0_14, %c0_15, %c0_16], %31 {strides = array<i32>} : memref<1x8x128xf32, #tpu.memory_space<vmem>>, vector<1x8x128xf32>,
    return
  }
  func.func @transform_0(%arg0: i32) -> (i32, i32) {
    %c0_i32 = arith.constant 0 : i32
    %c0_i32_0 = arith.constant 0 : i32
    return %arg0, %c0_i32 : i32, i32
  }
  func.func @transform_1(%arg0: i32) -> (i32, i32) {
    %c0_i32 = arith.constant 0 : i32
    %c0_i32_0 = arith.constant 0 : i32
    return %arg0, %c0_i32 : i32, i32
  }
  func.func @transform_2(%arg0: i32) -> (i32, i32) {
    %c0_i32 = arith.constant 0 : i32
    %c0_i32_0 = arith.constant 0 : i32
    return %arg0, %c0_i32 : i32, i32
  }
  func.func @transform_3(%arg0: i32) -> (i32, i32, i32) {
    %c0_i32 = arith.constant 0 : i32
    %c0_i32_0 = arith.constant 0 : i32
    %c0_i32_1 = arith.constant 0 : i32
    return %arg0, %c0_i32, %c0_i32_0 : i32, i32, i32
  }
  func.func @transform_4(%arg0: i32) -> (i32, i32, i32) {
    %c0_i32 = arith.constant 0 : i32
    %c0_i32_0 = arith.constant 0 : i32
    %c0_i32_1 = arith.constant 0 : i32
    return %arg0, %c0_i32, %c0_i32_0 : i32, i32, i32
  }
  func.func @transform_5(%arg0: i32) -> (i32, i32, i32) {
    %c0_i32 = arith.constant 0 : i32
    %c0_i32_0 = arith.constant 0 : i32
    %c0_i32_1 = arith.constant 0 : i32
    return %arg0, %c0_i32, %c0_i32_0 : i32, i32, i32
  }
}

</mosaic_0001>

<llo_original>
// kernel: tpu_custom_call.1
$region0: #{tpu_custom_call.1}
  #allocation0 [shape = 'u32[]', space=smem, size = 0x4, offset = 0x4, fixed_abs, tag = 'smem constant byte address 0x4 - core index']
  #allocation1 [shape = 'u32[144,128]{1,0:T(1,128)}', space=vmem, size = 0x12000, scoped, tag = 'internal scratch']
  %s0 = inlined_call_operand.hbm [shape: f32[16,128], index: 0, kind: input, shape index: {}]
  %s1 = inlined_call_operand.hbm [shape: f32[16,128], index: 1, kind: input, shape index: {}]
  %s2 = inlined_call_operand.hbm [shape: f32[16,128], index: 2, kind: input, shape index: {}]
  %s3 = inlined_call_operand.hbm [shape: f32[1,8,128], index: 3, kind: output, shape index: {0}]
  %s4 = inlined_call_operand.hbm [shape: f32[1,8,128], index: 4, kind: output, shape index: {1}]
  %s5 = inlined_call_operand.hbm [shape: f32[1,8,128], index: 5, kind: output, shape index: {2}]
  %6 = xla_tuple %s3, %s4, %s5
  %s7 = sld [smem:[#allocation0]]
  $region50: #{tpu_custom_call.1} parent=0
    _
  %s9 = ssub.s32 1, %s7
  %s10 = scalar_select 0, %s9, %s7
  $region1: #{tpu_custom_call.1} parent=0
    #allocation2 [shape = 'u8[8192]{0}', space=vmem, size = 0x2000, scoped, tag = 'input window, operand 0, single buffered']
    #allocation3 [shape = 's32[1]{0}', space=sflag, size = 0x4, scoped, tag = 'scoped memory for tpu_custom_call.1']
    #allocation4 [shape = 's32[1]{0}', space=sflag, size = 0x4, scoped, tag = 'scoped memory for tpu_custom_call.1']
    #allocation5 [shape = 'u8[8192]{0}', space=vmem, size = 0x2000, scoped, tag = 'input window, operand 1, single buffered']
    #allocation6 [shape = 's32[1]{0}', space=sflag, size = 0x4, scoped, tag = 'scoped memory for tpu_custom_call.1']
    #allocation7 [shape = 'u8[8192]{0}', space=vmem, size = 0x2000, scoped, tag = 'input window, operand 2, single buffered']
    #allocation8 [shape = 'u8[4096]{0}', space=vmem, size = 0x1000, scoped, tag = 'output window, operand 0, single buffered']
    #allocation9 [shape = 'u8[4096]{0}', space=vmem, size = 0x1000, scoped, tag = 'output window, operand 1, single buffered']
    #allocation10 [shape = 's32[1]{0}', space=sflag, size = 0x4, scoped, tag = 'scoped memory for tpu_custom_call.1']
    #allocation11 [shape = 'u8[4096]{0}', space=vmem, size = 0x1000, scoped, tag = 'output window, operand 2, single buffered']
    %11 = vsyncpa [#allocation3], 0
    %12 = vsyncpa [#allocation6], 0
    %13 = vsyncpa [#allocation4], 0
    %14 = vsyncpa [#allocation10], 0
    // Predicated region
    $region2: #{tpu_custom_call.1} parent=1 // pred_check
      _
    $region3: #{tpu_custom_call.1} parent=1 // pred_check_branch
      %16 = sbr.rel (0) target = $region5
    $region4: #{tpu_custom_call.1} parent=1 // pred_region
      %s18 = ssub.s32 256, 256
      %19 = vsyncadd [#allocation3], %s18
      %s20 = sshll.u32 [#allocation2], 4
      %s21 = int_to_ptr.vmem [resolvable:$true] %s20
      %26 = dma.hbm_to_vmem [thread:$0]  %s0, 256, %s21, [#allocation3], 128, 128, 8
    $region5: #{tpu_custom_call.1} parent=1 // pred_fallthru
      _
    // Predicated region
    $region6: #{tpu_custom_call.1} parent=1 // pred_check
      _
    $region7: #{tpu_custom_call.1} parent=1 // pred_check_branch
      %28 = sbr.rel (0) target = $region9
    $region8: #{tpu_custom_call.1} parent=1 // pred_region
      %s30 = ssub.s32 256, 256
      %31 = vsyncadd [#allocation6], %s30
      %s32 = sshll.u32 [#allocation5], 4
      %s33 = int_to_ptr.vmem [resolvable:$true] %s32
      %38 = dma.hbm_to_vmem [thread:$0]  %s1, 256, %s33, [#allocation6], 128, 128, 8
    $region9: #{tpu_custom_call.1} parent=1 // pred_fallthru
      _
    // Predicated region
    $region10: #{tpu_custom_call.1} parent=1 // pred_check
      _
    $region11: #{tpu_custom_call.1} parent=1 // pred_check_branch
      %40 = sbr.rel (0) target = $region13
    $region12: #{tpu_custom_call.1} parent=1 // pred_region
      %s42 = ssub.s32 256, 256
      %43 = vsyncadd [#allocation6], %s42
      %s44 = sshll.u32 [#allocation7], 4
      %s45 = int_to_ptr.vmem [resolvable:$true] %s44
      %50 = dma.hbm_to_vmem [thread:$0]  %s2, 256, %s45, [#allocation6], 128, 128, 8
    $region13: #{tpu_custom_call.1} parent=1 // pred_fallthru
      _
    // Predicated region
    $region14: #{tpu_custom_call.1} parent=1 // pred_check
      _
    $region15: #{tpu_custom_call.1} parent=1 // pred_check_branch
      %52 = sbr.rel (0) target = $region17
    $region16: #{tpu_custom_call.1} parent=1 // pred_region
      %53 = dma.done [#allocation3], 256
    $region17: #{tpu_custom_call.1} parent=1 // pred_fallthru
      _
    // Predicated region
    $region18: #{tpu_custom_call.1} parent=1 // pred_check
      _
    $region19: #{tpu_custom_call.1} parent=1 // pred_check_branch
      %55 = sbr.rel (0) target = $region21
    $region20: #{tpu_custom_call.1} parent=1 // pred_region
      %56 = dma.done [#allocation6], 256
    $region21: #{tpu_custom_call.1} parent=1 // pred_fallthru
      _
    // Predicated region
    $region22: #{tpu_custom_call.1} parent=1 // pred_check
      _
    $region23: #{tpu_custom_call.1} parent=1 // pred_check_branch
      %58 = sbr.rel (0) target = $region25
    $region24: #{tpu_custom_call.1} parent=1 // pred_region
      %59 = dma.done [#allocation6], 256
    $region25: #{tpu_custom_call.1} parent=1 // pred_fallthru
      _
    %v60 = vld [vmem:[#allocation2] sm:$0xff]
    %v61 = vld [vmem:[#allocation2 + $0x8] sm:$0xff]
    %v62 = vld [vmem:[#allocation5] sm:$0xff]
    %v63 = vld [vmem:[#allocation5 + $0x8] sm:$0xff]
    %v64 = vld [vmem:[#allocation7] sm:$0xff]
    %v65 = vld [vmem:[#allocation7 + $0x8] sm:$0xff]
    %v66 = vadd.f32 %v62, 1e-06
    %v67 = vadd.f32 %v63, 1e-06
    %v68 = vlog2.pop %v66
    %v69 = vmul.f32 %v68, 0.6931472
    %v70 = vlog2.pop %v67
    %v71 = vmul.f32 %v70, 0.6931472
    %v72 = vsub.f32 %v60, %v64
    %v73 = vsub.f32 %v61, %v65
    %v74 = vmul.f32 %v72, %v72
    %v75 = vmul.f32 %v73, %v73
    %v76 = vrcp.pop %v66
    %v77 = vrcp.pop %v67
    %v78 = vmul.f32 %v74, %v76
    %v79 = vmul.f32 %v75, %v77
    %v80 = vadd.f32 %v69, 0.0
    %v81 = vadd.f32 %v71, 0.0
    %v82 = vadd.f32 %v78, 0.0
    %v83 = vadd.f32 %v79, 0.0
    %v84 = vadd.f32 %v74, 0.0
    %v85 = vadd.f32 %v75, 0.0
    %v86 = vadd.f32 %v80, %v81
    %87 = vst [vmem:[#allocation8] sm:$0xff] %v86
    %v88 = vadd.f32 %v82, %v83
    %89 = vst [vmem:[#allocation9] sm:$0xff] %v88
    %v90 = vadd.f32 %v84, %v85
    %91 = vst [vmem:[#allocation11] sm:$0xff] %v90
    // Predicated region
    $region26: #{tpu_custom_call.1} parent=1 // pred_check
      _
    $region27: #{tpu_custom_call.1} parent=1 // pred_check_branch
      %93 = sbr.rel (0) target = $region29
    $region28: #{tpu_custom_call.1} parent=1 // pred_region
      %s95 = ssub.s32 128, 128
      %96 = vsyncadd [#allocation4], %s95
      %s98 = sshll.u32 [#allocation8], 4
      %s99 = int_to_ptr.vmem [resolvable:$true] %s98
      %101 = dma.vmem_to_hbm [thread:$0]  %s99, 128, %s3, [#allocation4]
    $region29: #{tpu_custom_call.1} parent=1 // pred_fallthru
      _
    // Predicated region
    $region30: #{tpu_custom_call.1} parent=1 // pred_check
      _
    $region31: #{tpu_custom_call.1} parent=1 // pred_check_branch
      %103 = sbr.rel (0) target = $region33
    $region32: #{tpu_custom_call.1} parent=1 // pred_region
      %s105 = ssub.s32 128, 128
      %106 = vsyncadd [#allocation10], %s105
      %s108 = sshll.u32 [#allocation9], 4
      %s109 = int_to_ptr.vmem [resolvable:$true] %s108
      %111 = dma.vmem_to_hbm [thread:$0]  %s109, 128, %s4, [#allocation10]
    $region33: #{tpu_custom_call.1} parent=1 // pred_fallthru
      _
    // Predicated region
    $region34: #{tpu_custom_call.1} parent=1 // pred_check
      _
    $region35: #{tpu_custom_call.1} parent=1 // pred_check_branch
      %113 = sbr.rel (0) target = $region37
    $region36: #{tpu_custom_call.1} parent=1 // pred_region
      %s115 = ssub.s32 128, 128
      %116 = vsyncadd [#allocation10], %s115
      %s118 = sshll.u32 [#allocation11], 4
      %s119 = int_to_ptr.vmem [resolvable:$true] %s118
      %121 = dma.vmem_to_hbm [thread:$0]  %s119, 128, %s5, [#allocation10]
    $region37: #{tpu_custom_call.1} parent=1 // pred_fallthru
      _
    // Predicated region
    $region38: #{tpu_custom_call.1} parent=1 // pred_check
      _
    $region39: #{tpu_custom_call.1} parent=1 // pred_check_branch
      %123 = sbr.rel (0) target = $region41
    $region40: #{tpu_custom_call.1} parent=1 // pred_region
      %124 = dma.done [#allocation4], 128
    $region41: #{tpu_custom_call.1} parent=1 // pred_fallthru
      _
    // Predicated region
    $region42: #{tpu_custom_call.1} parent=1 // pred_check
      _
    $region43: #{tpu_custom_call.1} parent=1 // pred_check_branch
      %126 = sbr.rel (0) target = $region45
    $region44: #{tpu_custom_call.1} parent=1 // pred_region
      %127 = dma.done [#allocation10], 128
    $region45: #{tpu_custom_call.1} parent=1 // pred_fallthru
      _
    // Predicated region
    $region46: #{tpu_custom_call.1} parent=1 // pred_check
      _
    $region47: #{tpu_custom_call.1} parent=1 // pred_check_branch
      %129 = sbr.rel (0) target = $region49
    $region48: #{tpu_custom_call.1} parent=1 // pred_region
      %130 = dma.done [#allocation10], 128
    $region49: #{tpu_custom_call.1} parent=1 // pred_fallthru
      _
    %131 = vsyncpa [#allocation3], 1
    %132 = vsyncpa [#allocation6], 1
    %133 = vsyncpa [#allocation4], 1
    %134 = vsyncpa [#allocation10], 1

</llo_original>
